<compile_context>
chip_gen: v6e
topology: v6e:2x2x1
jax: 0.10.0
libtpu: 0.0.40
codegen_flags: <defaults>
</compile_context>

<pallas_src>
import functools

import jax
import jax.numpy as jnp
from jax.experimental import pallas as pl
from jax.experimental.pallas import tpu as pltpu


def _make_yolo_kernel(H, W, scale_xy):
    inv_w = 1.0 / float(W)
    inv_h = 1.0 / float(H)
    sxy = float(scale_xy)
    off = 0.5 * (float(scale_xy) - 1.0)

    def kernel(anchors_ref, cgrid_ref, x_ref, out_ref):
        # anchors_ref: SMEM (A, 2) f32 (scalar-prefetched)
        # cgrid_ref:   VMEM (2, HW) f32 -- row 0 = x cell idx, row 1 = y cell idx
        #              (block index constant across the grid -> stays resident)
        # x_ref:       VMEM (bt, NO, HW) native dtype (f32 or bf16)
        # out_ref:     VMEM (bt, NO, HW) f32
        a = pl.program_id(1)
        anchor_w = anchors_ref[a, 0]
        anchor_h = anchors_ref[a, 1]

        xf = x_ref[...].astype(jnp.float32)          # on-chip cast (bf16 path)

        # Dense EUP passes: one sigmoid over the whole block (rows 2,3 are
        # computed but unused -- EUP slot is free here), one 2-row exp.
        sig = jax.nn.sigmoid(xf)                     # (bt, NO, HW)
        ewh = jnp.exp(xf[:, 2:4, :])                 # (bt, 2, HW)

        cx = cgrid_ref[0:1, :]                       # (1, HW), broadcasts over bt
        cy = cgrid_ref[1:2, :]

        bx = (sxy * sig[:, 0:1, :] - off + cx) * inv_w
        by = (sxy * sig[:, 1:2, :] - off + cy) * inv_h
        bw = ewh[:, 0:1, :] * anchor_w
        bh = ewh[:, 1:2, :] * anchor_h

        x1 = bx - 0.5 * bw
        y1 = by - 0.5 * bh
        x2 = x1 + bw
        y2 = y1 + bh

        # Assemble the whole block and store it once (no sublane-masked
        # partial stores): rows 0:4 boxes, row 4 obj, rows 5: class scores.
        out_ref[...] = jnp.concatenate(
            [x1, y1, x2, y2, sig[:, 4:, :]], axis=1)

    return kernel


def _pick_batch_tile(B, bytes_per_batch_slab, budget_bytes=4 << 20):
    """Largest divisor of B whose in+out block stays under ~budget_bytes."""
    bt = max(1, min(B, budget_bytes // max(bytes_per_batch_slab, 1)))
    while B % bt:
        bt -= 1
    return bt


@functools.partial(jax.jit,
                   static_argnames=("num_classes", "scale_xy", "torch_layout"))
def yolo_format_outputs(output_nchw, anchors, num_classes, scale_xy=1.0,
                        torch_layout=True):
    """Pallas implementation of YoloLayer._format_outputs.

    torch_layout=True  -> (boxes[B,H,W,A,4], b_o[B,H,W,A], b_scores[B,H,W,A,C])
    torch_layout=False -> fused (B, A, 5+C, H*W) f32 tensor (rows 0:4 boxes,
                          row 4 obj, rows 5: scores); skips the HBM layout pass.
    """
    B, CH, H, W = output_nchw.shape
    A = anchors.shape[0]
    NO = 5 + num_classes
    assert CH == A * NO, "channels must equal num_anchors * (5 + num_classes)"
    HW = H * W

    # Native dtype in, f32 decoded out.  No wrapper-side upcast.
    x = output_nchw.reshape(B, A, NO, HW)
    anchors_f = anchors.astype(jnp.float32)

    # Tiny VMEM-resident grid-cell constant (a few KB).
    idx = jnp.arange(HW, dtype=jnp.int32)
    cgrid = jnp.stack([(idx % W).astype(jnp.float32),
                       (idx // W).astype(jnp.float32)], axis=0)       # (2, HW)

    in_itemsize = jnp.dtype(output_nchw.dtype).itemsize
    bt = _pick_batch_tile(B, NO * HW * (4 + in_itemsize))

    kernel = _make_yolo_kernel(H, W, scale_xy)

    grid_spec = pltpu.PrefetchScalarGridSpec(
        num_scalar_prefetch=1,                       # anchors (A, 2) -> SMEM
        grid=(B // bt, A),
        in_specs=[
            pl.BlockSpec((2, HW), lambda i, a, anc: (0, 0)),
            pl.BlockSpec((bt, None, NO, HW), lambda i, a, anc: (i, a, 0, 0)),
        ],
        out_specs=pl.BlockSpec((bt, None, NO, HW),
                               lambda i, a, anc: (i, a, 0, 0)),
    )

    fused = pl.pallas_call(
        kernel,
        grid_spec=grid_spec,
        out_shape=jax.ShapeDtypeStruct((B, A, NO, HW), jnp.float32),
        compiler_params=pltpu.CompilerParams(
            dimension_semantics=("parallel", "parallel"),
            vmem_limit_bytes=32 * 1024 * 1024),
    )(anchors_f, cgrid, x)

    if not torch_layout:
        return fused

    # Single layout pass back to the PyTorch (b, h, w, A, ...) convention.
    # (This transpose, not the kernel, dominates HBM traffic -- consumers that
    #  can accept the channel-major layout should pass torch_layout=False.)
    out = fused.reshape(B, A, NO, H, W).transpose(0, 3, 4, 1, 2)   # (B,H,W,A,NO)
    boxes = out[..., :4]
    b_o = out[..., 4]
    b_scores = out[..., 5:]
    return boxes, b_o, b_scores


class YoloLayer:
    """JAX/Pallas port of the inference-time tensor path of YoloLayer."""

    def __init__(self, anchors, num_classes=80, scale_xy=1, iou_thresh=0.213,
                 lambda_noobj=0.5, lambda_coords=5.0, rpn_nms_thresh=0.7,
                 box_score_thresh=0.05):
        self.anchors = jnp.asarray(anchors, dtype=jnp.float32)
        self.num_classes = num_classes
        self.scale_xy = scale_xy
        self.iou_thresh = iou_thresh
        self.lambda_noobj = lambda_noobj
        self.lambda_coords = lambda_coords
        self.rpn_nms_thresh = rpn_nms_thresh
        self.box_score_thresh = box_score_thresh

    def __call__(self, output):
        # TODO(synk): post_process (dynamic-shape boolean masking + NMS) and the
        # training-mode loss path have no static-shape Pallas equivalent.
        return yolo_format_outputs(output, self.anchors, self.num_classes,
                                   float(self.scale_xy))


def _reference_format_outputs(output, anchors, num_classes, scale_xy=1.0):
    """Plain-JAX transcription of the PyTorch _format_outputs for validation."""
    b, _, h, w = output.shape
    A = anchors.shape[0]
    out = output.astype(jnp.float32).reshape(b, A, 5 + num_classes, h, w)
    out = out.transpose(0, 3, 4, 1, 2)                       # (b, h, w, A, 5+C)
    c_x = jnp.arange(w, dtype=jnp.float32).reshape(1, 1, -1, 1)
    c_y = jnp.arange(h, dtype=jnp.float32).reshape(1, -1, 1, 1)
    b_xy = scale_xy * jax.nn.sigmoid(out[..., :2]) - 0.5 * (scale_xy - 1)
    bx = (b_xy[..., 0] + c_x) / w
    by = (b_xy[..., 1] + c_y) / h
    b_xy = jnp.stack([bx, by], axis=-1)
    b_wh = jnp.exp(out[..., 2:4]) * anchors.reshape(1, 1, 1, -1, 2)
    top_left = b_xy - 0.5 * b_wh
    bot_right = top_left + b_wh
    boxes = jnp.concatenate([top_left, bot_right], axis=-1)
    b_o = jax.nn.sigmoid(out[..., 4])
    b_scores = jax.nn.sigmoid(out[..., 5:])
    return boxes, b_o, b_scores


if __name__ == "__main__":
    key = jax.random.PRNGKey(0)

    B, H, W = 2, 16, 16
    num_classes = 11                      # small class count for the demo
    anchors = jnp.array([[0.10, 0.13], [0.30, 0.22], [0.45, 0.55]],
                        dtype=jnp.float32)          # (A=3, 2), deterministic
    A = anchors.shape[0]
    CH = A * (5 + num_classes)            # 3 * 16 = 48

    x = jax.random.normal(key, (B, CH, H, W), dtype=jnp.float32)

    layer = YoloLayer(anchors, num_classes=num_classes, scale_xy=1.0)

    # float32 path
    boxes, b_o, b_scores = layer(x)
    jax.block_until_ready((boxes, b_o, b_scores))

    ref_boxes, ref_o, ref_scores = _reference_format_outputs(
        x, anchors, num_classes, scale_xy=1.0)

    assert boxes.shape == (B, H, W, A, 4)
    assert b_o.shape == (B, H, W, A)
    assert b_scores.shape == (B, H, W, A, num_classes)
    assert jnp.allclose(boxes, ref_boxes, rtol=1e-5, atol=1e-5)
    assert jnp.allclose(b_o, ref_o, rtol=1e-5, atol=1e-5)
    assert jnp.allclose(b_scores, ref_scores, rtol=1e-5, atol=1e-5)

    # bf16 path (native-dtype load + on-chip cast)
    x_bf16 = x.astype(jnp.bfloat16)
    boxes2, b_o2, b_scores2 = layer(x_bf16)
    jax.block_until_ready((boxes2, b_o2, b_scores2))
    ref_boxes2, ref_o2, ref_scores2 = _reference_format_outputs(
        x_bf16, anchors, num_classes, scale_xy=1.0)
    assert jnp.allclose(boxes2, ref_boxes2, rtol=1e-4, atol=1e-4)
    assert jnp.allclose(b_o2, ref_o2, rtol=1e-4, atol=1e-4)
    assert jnp.allclose(b_scores2, ref_scores2, rtol=1e-4, atol=1e-4)

    print("KERNEL_OK")
</pallas_src>

<mosaic_0001>
module attributes {stable_mosaic.version = 11 : i64} {
  func.func @kernel(%arg0: i32, %arg1: i32, %arg2: memref<3x2xf32, #tpu.memory_space<smem>>, %arg3: memref<2x256xf32, #tpu.memory_space<vmem>>, %arg4: memref<2x1x16x256xf32, #tpu.memory_space<vmem>>, %arg5: memref<2x1x16x256xf32, #tpu.memory_space<vmem>>) attributes {dimension_semantics = [#tpu.dimension_semantics<parallel>, #tpu.dimension_semantics<parallel>], iteration_bounds = array<i64: 1, 3>, scalar_prefetch = 1 : i64, scratch_operands = 0 : i64, tpu.core_type = #tpu.core_type<tc>, window_params = [{pipeline_mode = #tpu.pipeline_mode<synchronous>, transform_indices = @transform_0, window_bounds = array<i64: 2, 256>}, {transform_indices = @transform_1, window_bounds = array<i64: 2, 1, 16, 256>}, {transform_indices = @transform_2, window_bounds = array<i64: 2, 1, 16, 256>}]} {
    %0 = arith.index_cast %arg1 : i32 to index
    %c0 = arith.constant 0 : index
    %1 = memref.load %arg2[%0, %c0] : memref<3x2xf32, #tpu.memory_space<smem>>
    %2 = arith.index_cast %arg1 : i32 to index
    %c1 = arith.constant 1 : index
    %3 = memref.load %arg2[%2, %c1] : memref<3x2xf32, #tpu.memory_space<smem>>
    %c0_0 = arith.constant 0 : index
    %c0_1 = arith.constant 0 : index
    %c0_2 = arith.constant 0 : index
    %c0_3 = arith.constant 0 : index
    %4 = vector.load %arg4[%c0_0, %c0_1, %c0_2, %c0_3] : memref<2x1x16x256xf32, #tpu.memory_space<vmem>>, vector<2x1x16x256xf32>
    %5 = vector.shape_cast %4 : vector<2x1x16x256xf32> to vector<2x16x256xf32>
    %6 = arith.negf %5 : vector<2x16x256xf32>
    %7 = math.exp %6 : vector<2x16x256xf32>
    %cst = arith.constant 1.000000e+00 : f32
    %8 = vector.broadcast %cst : f32 to vector<2x16x256xf32>
    %9 = arith.addf %8, %7 : vector<2x16x256xf32>
    %10 = arith.divf %8, %9 : vector<2x16x256xf32>
    %11 = vector.extract_strided_slice %5 {offsets = [0, 2, 0], sizes = [2, 2, 256], strides = [1, 1, 1]} : vector<2x16x256xf32> to vector<2x2x256xf32>
    %12 = math.exp %11 : vector<2x2x256xf32>
    %c0_4 = arith.constant 0 : index
    %c0_5 = arith.constant 0 : index
    %13 = vector.load %arg3[%c0_4, %c0_5] : memref<2x256xf32, #tpu.memory_space<vmem>>, vector<1x256xf32>
    %c1_6 = arith.constant 1 : index
    %c0_7 = arith.constant 0 : index
    %14 = vector.load %arg3[%c1_6, %c0_7] : memref<2x256xf32, #tpu.memory_space<vmem>>, vector<1x256xf32>
    %15 = vector.extract_strided_slice %10 {offsets = [0, 0, 0], sizes = [2, 1, 256], strides = [1, 1, 1]} : vector<2x16x256xf32> to vector<2x1x256xf32>
    %cst_8 = arith.constant 1.000000e+00 : f32
    %16 = vector.broadcast %cst_8 : f32 to vector<2x1x256xf32>
    %17 = arith.mulf %16, %15 : vector<2x1x256xf32>
    %cst_9 = arith.constant 0.000000e+00 : f32
    %18 = vector.broadcast %cst_9 : f32 to vector<2x1x256xf32>
    %19 = arith.subf %17, %18 : vector<2x1x256xf32>
    %20 = vector.shape_cast %13 : vector<1x256xf32> to vector<1x1x256xf32>
    %21 = vector.broadcast %20 : vector<1x1x256xf32> to vector<2x1x256xf32>
    %22 = arith.addf %19, %21 : vector<2x1x256xf32>
    %cst_10 = arith.constant 6.250000e-02 : f32
    %23 = vector.broadcast %cst_10 : f32 to vector<2x1x256xf32>
    %24 = arith.mulf %22, %23 : vector<2x1x256xf32>
    %25 = vector.extract_strided_slice %10 {offsets = [0, 1, 0], sizes = [2, 1, 256], strides = [1, 1, 1]} : vector<2x16x256xf32> to vector<2x1x256xf32>
    %cst_11 = arith.constant 1.000000e+00 : f32
    %26 = vector.broadcast %cst_11 : f32 to vector<2x1x256xf32>
    %27 = arith.mulf %26, %25 : vector<2x1x256xf32>
    %cst_12 = arith.constant 0.000000e+00 : f32
    %28 = vector.broadcast %cst_12 : f32 to vector<2x1x256xf32>
    %29 = arith.subf %27, %28 : vector<2x1x256xf32>
    %30 = vector.shape_cast %14 : vector<1x256xf32> to vector<1x1x256xf32>
    %31 = vector.broadcast %30 : vector<1x1x256xf32> to vector<2x1x256xf32>
    %32 = arith.addf %29, %31 : vector<2x1x256xf32>
    %cst_13 = arith.constant 6.250000e-02 : f32
    %33 = vector.broadcast %cst_13 : f32 to vector<2x1x256xf32>
    %34 = arith.mulf %32, %33 : vector<2x1x256xf32>
    %35 = vector.extract_strided_slice %12 {offsets = [0, 0, 0], sizes = [2, 1, 256], strides = [1, 1, 1]} : vector<2x2x256xf32> to vector<2x1x256xf32>
    %36 = vector.broadcast %1 : f32 to vector<2x1x256xf32>
    %37 = arith.mulf %35, %36 : vector<2x1x256xf32>
    %38 = vector.extract_strided_slice %12 {offsets = [0, 1, 0], sizes = [2, 1, 256], strides = [1, 1, 1]} : vector<2x2x256xf32> to vector<2x1x256xf32>
    %39 = vector.broadcast %3 : f32 to vector<2x1x256xf32>
    %40 = arith.mulf %38, %39 : vector<2x1x256xf32>
    %cst_14 = arith.constant 5.000000e-01 : f32
    %41 = vector.broadcast %cst_14 : f32 to vector<2x1x256xf32>
    %42 = arith.mulf %41, %37 : vector<2x1x256xf32>
    %43 = arith.subf %24, %42 : vector<2x1x256xf32>
    %cst_15 = arith.constant 5.000000e-01 : f32
    %44 = vector.broadcast %cst_15 : f32 to vector<2x1x256xf32>
    %45 = arith.mulf %44, %40 : vector<2x1x256xf32>
    %46 = arith.subf %34, %45 : vector<2x1x256xf32>
    %47 = arith.addf %43, %37 : vector<2x1x256xf32>
    %48 = arith.addf %46, %40 : vector<2x1x256xf32>
    %49 = vector.extract_strided_slice %10 {offsets = [0, 4, 0], sizes = [2, 12, 256], strides = [1, 1, 1]} : vector<2x16x256xf32> to vector<2x12x256xf32>
    %50 = tpu.concatenate %43, %46, %47, %48, %49 in 1 : vector<2x1x256xf32>, vector<2x1x256xf32>, vector<2x1x256xf32>, vector<2x1x256xf32>, vector<2x12x256xf32> -> vector<2x16x256xf32>
    %c0_16 = arith.constant 0 : index
    %c0_17 = arith.constant 0 : index
    %c0_18 = arith.constant 0 : index
    %c0_19 = arith.constant 0 : index
    %51 = vector.load %arg5[%c0_16, %c0_17, %c0_18, %c0_19] : memref<2x1x16x256xf32, #tpu.memory_space<vmem>>, vector<2x1x16x256xf32>
    %52 = vector.shape_cast %51 : vector<2x1x16x256xf32> to vector<2x16x256xf32>
    %53 = vector.shape_cast %50 : vector<2x16x256xf32> to vector<2x1x16x256xf32>
    tpu.vector_store %arg5[%c0_16, %c0_17, %c0_18, %c0_19], %53 {strides = array<i32>} : memref<2x1x16x256xf32, #tpu.memory_space<vmem>>, vector<2x1x16x256xf32>,
    return
  }
  func.func @transform_0(%arg0: i32, %arg1: i32, %arg2: memref<3x2xf32, #tpu.memory_space<smem>>) -> (i32, i32) {
    %c0_i32 = arith.constant 0 : i32
    %c0_i32_0 = arith.constant 0 : i32
    %c0_i32_1 = arith.constant 0 : i32
    return %c0_i32, %c0_i32_0 : i32, i32
  }
  func.func @transform_1(%arg0: i32, %arg1: i32, %arg2: memref<3x2xf32, #tpu.memory_space<smem>>) -> (i32, i32, i32, i32) {
    %c0_i32 = arith.constant 0 : i32
    %c0_i32_0 = arith.constant 0 : i32
    %c0_i32_1 = arith.constant 0 : i32
    return %arg0, %arg1, %c0_i32, %c0_i32_0 : i32, i32, i32, i32
  }
  func.func @transform_2(%arg0: i32, %arg1: i32, %arg2: memref<3x2xf32, #tpu.memory_space<smem>>) -> (i32, i32, i32, i32) {
    %c0_i32 = arith.constant 0 : i32
    %c0_i32_0 = arith.constant 0 : i32
    %c0_i32_1 = arith.constant 0 : i32
    return %arg0, %arg1, %c0_i32, %c0_i32_0 : i32, i32, i32, i32
  }
}

</mosaic_0001>

<llo_original>
// kernel: yolo_format_outputs.1
$region0: #{yolo_format_outputs.1}
  #allocation0 [shape = 'u32[]', space=smem, size = 0x4, offset = 0x4, fixed_abs, tag = 'smem constant byte address 0x4 - core index']
  #allocation1 [shape = 'u32[144,128]{1,0:T(1,128)}', space=vmem, size = 0x12000, scoped, tag = 'internal scratch']
  #allocation2 [shape = 's32[1]{0}', space=sflag, size = 0x4, scoped, tag = 'scoped memory for yolo_format_outputs.1']
  #allocation3 [shape = 'u8[2048]{0}', space=smem, size = 0x800, scoped, tag = 'prefetched SMEM operand 0']
  %s0 = inlined_call_operand.vmem [shape: f32[3,2], index: 0, kind: input, shape index: {}]
  %s1 = inlined_call_operand.vmem [shape: f32[2,256], index: 1, kind: input, shape index: {}]
  %s2 = inlined_call_operand.vmem [shape: f32[2,3,16,256], index: 2, kind: input, shape index: {}]
  %s3 = inlined_call_operand.vmem [shape: f32[2,3,16,256], index: 3, kind: output, shape index: {}]
  %s4 = sld [smem:[#allocation0]]
  $region83: #{yolo_format_outputs.1} parent=0
    _
  %s6 = ssub.s32 1, %s4
  %s7 = scalar_select 0, %s6, %s4
  %s8 = sshll.u32 %s0, 4
  %s9 = int_to_ptr.vmem [resolvable:$true] %s8
  %11 = dma.vmem_to_smem %s9, 64, [#allocation3], [#allocation2]
  %12 = dma.done [#allocation2], 64
  %13 = sfence
  $region1: #{yolo_format_outputs.1} parent=0
    #allocation4 [shape = 'u8[65536]{0}', space=vmem, size = 0x10000, scoped, tag = 'input window, operand 2']
    #allocation5 [shape = 'u8[65536]{0}', space=vmem, size = 0x10000, scoped, tag = 'output window, operand 0']
    loop: start=0, step=1, limit=5
    $region2: #{yolo_format_outputs.1} parent=1 // loop_pre_header
      _
    $region3: #{yolo_format_outputs.1} parent=1 // loop_header
      %s15 = sphi 0, %s19
      %p16 = scmp.ge.s32.totalorder %s15, 5
      %s22 = sphi 0, %s34
      %s23 = sphi 0, %s30
      %s24 = sphi 0, %s22
      %s25 = sphi 0, %s23
      %s26 = sphi 0, %s24
      %s27 = sphi 0, %s25
      %s35 = sphi 0, %s35
      %s37 = sphi 0, %s35
      %s38 = sphi 0, %s37
      %s52 = sphi 0, %s38
      %s60 = sphi 0, %s62
      %s63 = sphi 0, %s60
      %s64 = sphi 0, %s63
      %s80 = sphi 0, %s64
      %s88 = sphi 0, %s90
      %s91 = sphi 0, %s88
      %s92 = sphi 0, %s91
      %s108 = sphi 0, %s92
    $region4: #{yolo_format_outputs.1} parent=1 // loop_header_branch
      %18 = sbr.rel (%p16) target = $region8
    $region5: #{yolo_format_outputs.1} parent=1 // loop_body
      %s20 = ssub.s32 %s15, 1
      %s21 = ssub.s32 %s15, 2
      %s28 = sadd.s32 1, %s23
      %p29 = scmp.ge.s32.totalorder %s28, 3
      %s30 = scalar_select %p29, 0, %s28
      %s31 = sadd.s32 1, %s22
      %s32 = scalar_select %p29, %s31, %s22
      %p33 = scmp.ge.s32.totalorder %s32, 1
      %s34 = scalar_select %p33, 0, %s32
      %s36 = sadd.s32 %s35, 1
      %p39 = scmp.eq.s32.totalorder %s15, 2
      %p40 = scmp.ne.s32.totalorder %s35, %s37
      %p41 = scmp.eq.s32.totalorder %s15, 0
      %p42 = por %p40, %p41
      %p43 = scmp.ne.s32.totalorder %s35, %s37
      %p44 = scmp.eq.s32.totalorder %s20, 2
      %p45 = por %p43, %p44
      %p46 = scmp.ne.s32.totalorder %s37, %s38
      %p47 = scmp.eq.s32.totalorder %s20, 0
      %p48 = por %p46, %p47
      %p49 = scmp.ne.s32.totalorder %s37, %s38
      %p50 = scmp.eq.s32.totalorder %s21, 2
      %p51 = por %p49, %p50
      %p53 = scmp.ne.s32.totalorder %s38, %s52
      %p54 = scmp.eq.s32.totalorder %s21, 0
      %p55 = por %p53, %p54
      %s56 = ssub.s32 %s22, %s34
      %s57 = ssub.s32 %s23, %s30
      %s58 = sor.u32 %s56, %s57
      %p59 = scmp.eq.s32.totalorder %s58, 0
      %s61 = sadd.s32 %s60, 1
      %s62 = scalar_select %p59, %s60, %s61
      %p65 = pneg %p59
      %p66 = scmp.eq.s32.totalorder %s15, 2
      %p67 = por %p65, %p66
      %p68 = scmp.ne.s32.totalorder %s60, %s63
      %p69 = scmp.eq.s32.totalorder %s15, 0
      %p70 = por %p68, %p69
      %p71 = scmp.ne.s32.totalorder %s60, %s63
      %p72 = scmp.eq.s32.totalorder %s20, 2
      %p73 = por %p71, %p72
      %p74 = scmp.ne.s32.totalorder %s63, %s64
      %p75 = scmp.eq.s32.totalorder %s20, 0
      %p76 = por %p74, %p75
      %p77 = scmp.ne.s32.totalorder %s63, %s64
      %p78 = scmp.eq.s32.totalorder %s21, 2
      %p79 = por %p77, %p78
      %p81 = scmp.ne.s32.totalorder %s64, %s80
      %p82 = scmp.eq.s32.totalorder %s21, 0
      %p83 = por %p81, %p82
      %s84 = ssub.s32 %s22, %s34
      %s85 = ssub.s32 %s23, %s30
      %s86 = sor.u32 %s84, %s85
      %p87 = scmp.eq.s32.totalorder %s86, 0
      %s89 = sadd.s32 %s88, 1
      %s90 = scalar_select %p87, %s88, %s89
      %p93 = pneg %p87
      %p94 = scmp.eq.s32.totalorder %s15, 2
      %p95 = por %p93, %p94
      %p96 = scmp.ne.s32.totalorder %s88, %s91
      %p97 = scmp.eq.s32.totalorder %s15, 0
      %p98 = por %p96, %p97
      %p99 = scmp.ne.s32.totalorder %s88, %s91
      %p100 = scmp.eq.s32.totalorder %s20, 2
      %p101 = por %p99, %p100
      %p102 = scmp.ne.s32.totalorder %s91, %s92
      %p103 = scmp.eq.s32.totalorder %s20, 0
      %p104 = por %p102, %p103
      %p105 = scmp.ne.s32.totalorder %s91, %s92
      %p106 = scmp.eq.s32.totalorder %s21, 2
      %p107 = por %p105, %p106
      %p109 = scmp.ne.s32.totalorder %s92, %s108
      %p110 = scmp.eq.s32.totalorder %s21, 0
      %p111 = por %p109, %p110
      %p112 = scmp.le.s32.totalorder 1, %s15
      %p113 = scmp.lt.s32.totalorder %s15, 4
      %p114 = pnand %p112, %p113
      %p115 = pneg %p114
      // Predicated region
      $region9: #{yolo_format_outputs.1} parent=5 // pred_check
        _
      $region10: #{yolo_format_outputs.1} parent=5 // pred_check_branch
        %117 = sbr.rel (%p114) target = $region12
      $region11: #{yolo_format_outputs.1} parent=5 // pred_region
        %s118 = ssub.s32 %s15, 1
        // Predicated region
        $region13: #{yolo_format_outputs.1} parent=11 // pred_check
          %p119 = pneg %p48
        $region14: #{yolo_format_outputs.1} parent=11 // pred_check_branch
          %121 = sbr.rel (%p119) target = $region16
        $region15: #{yolo_format_outputs.1} parent=11 // pred_region
          _
        $region16: #{yolo_format_outputs.1} parent=11 // pred_fallthru
          _
      $region12: #{yolo_format_outputs.1} parent=5 // pred_fallthru
        _
      %p122 = scmp.lt.s32.totalorder %s15, 3
      // Predicated region
      $region17: #{yolo_format_outputs.1} parent=5 // pred_check
        %p123 = pneg %p122
      $region18: #{yolo_format_outputs.1} parent=5 // pred_check_branch
        %125 = sbr.rel (%p123) target = $region20
      $region19: #{yolo_format_outputs.1} parent=5 // pred_region
        // Predicated region
        $region21: #{yolo_format_outputs.1} parent=19 // pred_check
          %p126 = pneg %p70
        $region22: #{yolo_format_outputs.1} parent=19 // pred_check_branch
          %128 = sbr.rel (%p126) target = $region24
        $region23: #{yolo_format_outputs.1} parent=19 // pred_region
          %s129 = sand.u32 %s60, 1
          %s130 = sand.u32 %s60, 1
          %s131 = smul.addr %s130, 64
          %s132 = scalar_lea.vmem [#allocation4], %s131
          %s133 = smul.u32 2, %s22
          %s134 = smul.addr %s23, 4
          %s135 = smul.addr %s133, 12
          %s136 = sadd.s32 %s134, %s135
          %s137 = smul.addr %s136, 8
          %s138 = scalar_lea.vmem %s2, %s137
          // Predicated region
          $region25: #{yolo_format_outputs.1} parent=23 // pred_check
            _
          $region26: #{yolo_format_outputs.1} parent=23 // pred_check_branch
            %140 = sbr.rel (0) target = $region28
          $region27: #{yolo_format_outputs.1} parent=23 // pred_region
            // Predicated region
            $region29: #{yolo_format_outputs.1} parent=27 // pred_check
              _
            $region30: #{yolo_format_outputs.1} parent=27 // pred_check_branch
              %142 = sbr.rel (0) target = $region32
            $region31: #{yolo_format_outputs.1} parent=27 // pred_region
              loop: start=0, step=1, limit=1
              $region33: #{yolo_format_outputs.1} parent=31 // loop_pre_header
                _
              $region34: #{yolo_format_outputs.1} parent=31 // loop_header
                %s144 = sphi 0, %s148
                %p145 = scmp.ge.s32.totalorder %s144, 1
                %s149 = sphi %s138, %s138
                %s150 = sphi %s132, %s132
              $region35: #{yolo_format_outputs.1} parent=31 // loop_header_branch
                %147 = sbr.rel (%p145) target = $region39
              $region36: #{yolo_format_outputs.1} parent=31 // loop_body
                %v151 = vld [vmem:[%s149] sm:$0xff]
                %152 = vst [vmem:[%s150] sm:$0xff] %v151
                %v153 = vld [vmem:[%s149 + $0x8] sm:$0xff]
                %154 = vst [vmem:[%s150 + $0x8] sm:$0xff] %v153
                %v155 = vld [vmem:[%s149 + $0x10] sm:$0xff]
                %156 = vst [vmem:[%s150 + $0x10] sm:$0xff] %v155
                %v157 = vld [vmem:[%s149 + $0x18] sm:$0xff]
                %158 = vst [vmem:[%s150 + $0x18] sm:$0xff] %v157
                %v159 = vld [vmem:[%s149 + $0x60] sm:$0xff]
                %160 = vst [vmem:[%s150 + $0x20] sm:$0xff] %v159
                %v161 = vld [vmem:[%s149 + $0x68] sm:$0xff]
                %162 = vst [vmem:[%s150 + $0x28] sm:$0xff] %v161
                %v163 = vld [vmem:[%s149 + $0x70] sm:$0xff]
                %164 = vst [vmem:[%s150 + $0x30] sm:$0xff] %v163
                %v165 = vld [vmem:[%s149 + $0x78] sm:$0xff]
                %166 = vst [vmem:[%s150 + $0x38] sm:$0xff] %v165
              $region37: #{yolo_format_outputs.1} parent=31 // loop_footer
                %s148 = sadd.s32 1, %s144
              $region38: #{yolo_format_outputs.1} parent=31 // loop_footer_branch
                %143 = sbr.rel target = $region34
              $region39: #{yolo_format_outputs.1} parent=31 // loop_exit
                _
            $region32: #{yolo_format_outputs.1} parent=27 // pred_fallthru
              _
            // Predicated region
            $region40: #{yolo_format_outputs.1} parent=27 // pred_check
              _
            $region41: #{yolo_format_outputs.1} parent=27 // pred_check_branch
              %168 = sbr.rel target = $region43
            $region42: #{yolo_format_outputs.1} parent=27 // pred_region
              _
            $region43: #{yolo_format_outputs.1} parent=27 // pred_fallthru
              _
          $region28: #{yolo_format_outputs.1} parent=23 // pred_fallthru
            _
          %169 = vnop
        $region24: #{yolo_format_outputs.1} parent=19 // pred_fallthru
          _
      $region20: #{yolo_format_outputs.1} parent=5 // pred_fallthru
        _
      %p170 = scmp.le.s32.totalorder 1, %s15
      %p171 = scmp.lt.s32.totalorder %s15, 4
      %p172 = pnand %p170, %p171
      %p173 = pneg %p172
      // Predicated region
      $region44: #{yolo_format_outputs.1} parent=5 // pred_check
        _
      $region45: #{yolo_format_outputs.1} parent=5 // pred_check_branch
        %175 = sbr.rel (%p172) target = $region47
      $region46: #{yolo_format_outputs.1} parent=5 // pred_region
        %s176 = ssub.s32 %s15, 1
        %s177 = sand.u32 %s63, 1
        %s178 = sand.u32 %s63, 1
        %s179 = smul.addr %s178, 64
        %s180 = scalar_lea.vmem [#allocation4], %s179
        // Predicated region
        $region48: #{yolo_format_outputs.1} parent=46 // pred_check
          %p181 = pneg %p76
        $region49: #{yolo_format_outputs.1} parent=46 // pred_check_branch
          %183 = sbr.rel (%p181) target = $region51
        $region50: #{yolo_format_outputs.1} parent=46 // pred_region
          _
        $region51: #{yolo_format_outputs.1} parent=46 // pred_fallthru
          _
        %p184 = pneg %p48
        %p185 = pneg %p45
        %s186 = sand.u32 %s63, 1
        %s187 = sand.u32 %s63, 1
        %s188 = smul.addr %s187, 64
        %s189 = scalar_lea.vmem [#allocation4], %s188
        %p190 = pneg %p76
        %p191 = pneg %p73
        %p192 = pneg %p104
        %p193 = pneg %p101
        %s194 = sand.u32 %s91, 1
        %s195 = sand.u32 %s91, 1
        %s196 = smul.addr %s195, 64
        %s197 = scalar_lea.vmem [#allocation5], %s196
        %s198 = smul.u32 2, %s24
        %s199 = smul.u32 2, %s24
        %s200 = smul.u32 %s25, 128
        %s201 = sld [smem:[#allocation3 + %s200]]
        %s202 = sadd.s32 %s200, 1
        %s203 = sld [smem:[#allocation3 + %s202]]
        %v204 = vld [vmem:[%s180] sm:$0xff]
        %v205 = vld [vmem:[%s180 + $0x8] sm:$0xff]
        %v206 = vld [vmem:[%s180 + $0x10] sm:$0xff]
        %v207 = vld [vmem:[%s180 + $0x18] sm:$0xff]
        %v208 = vld [vmem:[%s180 + $0x20] sm:$0xff]
        %v209 = vld [vmem:[%s180 + $0x28] sm:$0xff]
        %v210 = vld [vmem:[%s180 + $0x30] sm:$0xff]
        %v211 = vld [vmem:[%s180 + $0x38] sm:$0xff]
        %v212 = vxor.u32 %v204, 2147483648
        %v213 = vxor.u32 %v205, 2147483648
        %v214 = vxor.u32 %v206, 2147483648
        %v215 = vxor.u32 %v207, 2147483648
        %v216 = vxor.u32 %v208, 2147483648
        %v217 = vxor.u32 %v209, 2147483648
        %v218 = vxor.u32 %v210, 2147483648
        %v219 = vxor.u32 %v211, 2147483648
        %v220 = vmul.f32 %v212, 1.442695
        %v221 = vpow.pop %v220
        %v222 = vmul.f32 %v213, 1.442695
        %v223 = vpow.pop %v222
        %v224 = vmul.f32 %v214, 1.442695
        %v225 = vpow.pop %v224
        %v226 = vmul.f32 %v215, 1.442695
        %v227 = vpow.pop %v226
        %v228 = vmul.f32 %v216, 1.442695
        %v229 = vpow.pop %v228
        %v230 = vmul.f32 %v217, 1.442695
        %v231 = vpow.pop %v230
        %v232 = vmul.f32 %v218, 1.442695
        %v233 = vpow.pop %v232
        %v234 = vmul.f32 %v219, 1.442695
        %v235 = vpow.pop %v234
        %v236 = vadd.f32 %v221, 1.0
        %v237 = vadd.f32 %v223, 1.0
        %v238 = vadd.f32 %v225, 1.0
        %v239 = vadd.f32 %v227, 1.0
        %v240 = vadd.f32 %v229, 1.0
        %v241 = vadd.f32 %v231, 1.0
        %v242 = vadd.f32 %v233, 1.0
        %v243 = vadd.f32 %v235, 1.0
        %v244 = vrcp.pop %v236
        %v245 = vmul.f32 1.0, %v244
        %v246 = vrcp.pop %v237
        %v247 = vmul.f32 1.0, %v246
        %v248 = vrcp.pop %v238
        %v249 = vmul.f32 1.0, %v248
        %v250 = vrcp.pop %v239
        %v251 = vmul.f32 1.0, %v250
        %v252 = vrcp.pop %v240
        %v253 = vmul.f32 1.0, %v252
        %v254 = vrcp.pop %v241
        %v255 = vmul.f32 1.0, %v254
        %v256 = vrcp.pop %v242
        %v257 = vmul.f32 1.0, %v256
        %v258 = vrcp.pop %v243
        %v259 = vmul.f32 1.0, %v258
        %v260 = vmul.f32 %v204, 1.442695
        %v261 = vpow.pop %v260
        %v262 = vmul.f32 %v205, 1.442695
        %v263 = vpow.pop %v262
        %v264 = vmul.f32 %v208, 1.442695
        %v265 = vpow.pop %v264
        %v266 = vmul.f32 %v209, 1.442695
        %v267 = vpow.pop %v266
        %v268 = vld [vmem:[%s1] ss:$2 sm:$0x3]
        %s269 = scalar_lea.vmem %s1, 1
        %v270 = vld [vmem:[%s269] ss:$2 sm:$0x3]
        %v272 = vlaneseq
        %v273 = vshrl.u32 %v272, 7
        %v274 = vsub.s32 0, %v273
        %v275 = vrot.slane %v268, %v274
        %v276 = vlaneseq
        %v277 = vshrl.u32 %v276, 7
        %v278 = vsub.s32 1, %v277
        %v279 = vrot.slane %v268, %v278
        %v282 = vadd.f32 %v245, %v275
        %v283 = vadd.f32 %v247, %v279
        %v284 = vadd.f32 %v253, %v275
        %v285 = vadd.f32 %v255, %v279
        %v286 = vmul.f32 %v282, 0.0625
        %v287 = vmul.f32 %v283, 0.0625
        %v288 = vmul.f32 %v284, 0.0625
        %v289 = vmul.f32 %v285, 0.0625
        %v291 = vlaneseq
        %v292 = vshrl.u32 %v291, 7
        %v293 = vsub.s32 0, %v292
        %v294 = vrot.slane %v270, %v293
        %v295 = vlaneseq
        %v296 = vshrl.u32 %v295, 7
        %v297 = vsub.s32 1, %v296
        %v298 = vrot.slane %v270, %v297
        %v301 = vadd.f32 %v245, %v294
        %v302 = vadd.f32 %v247, %v298
        %v303 = vadd.f32 %v253, %v294
        %v304 = vadd.f32 %v255, %v298
        %v305 = vmul.f32 %v301, 0.0625
        %v306 = vmul.f32 %v302, 0.0625
        %v307 = vmul.f32 %v303, 0.0625
        %v308 = vmul.f32 %v304, 0.0625
        %v309 = vstv %s201
        %v310 = vmul.f32 %v261, %v309
        %v311 = vmul.f32 %v263, %v309
        %v312 = vmul.f32 %v265, %v309
        %v313 = vmul.f32 %v267, %v309
        %v314 = vstv %s203
        %v315 = vmul.f32 %v261, %v314
        %v316 = vmul.f32 %v263, %v314
        %v317 = vmul.f32 %v265, %v314
        %v318 = vmul.f32 %v267, %v314
        %v319 = vmul.f32 %v310, 0.5
        %v320 = vmul.f32 %v311, 0.5
        %v321 = vmul.f32 %v312, 0.5
        %v322 = vmul.f32 %v313, 0.5
        %v327 = vrot.slane %v319, 2
        %v328 = vrot.slane %v320, 2
        %v329 = vrot.slane %v321, 2
        %v330 = vrot.slane %v322, 2
        %v335 = vsub.f32 %v286, %v327
        %v336 = vsub.f32 %v287, %v328
        %v337 = vsub.f32 %v288, %v329
        %v338 = vsub.f32 %v289, %v330
        %v339 = vmul.f32 %v315, 0.5
        %v340 = vmul.f32 %v316, 0.5
        %v341 = vmul.f32 %v317, 0.5
        %v342 = vmul.f32 %v318, 0.5
        %v347 = vrot.slane %v339, 2
        %v348 = vrot.slane %v340, 2
        %v349 = vrot.slane %v341, 2
        %v350 = vrot.slane %v342, 2
        %v355 = vsub.f32 %v305, %v347
        %v356 = vsub.f32 %v306, %v348
        %v357 = vsub.f32 %v307, %v349
        %v358 = vsub.f32 %v308, %v350
        %v363 = vrot.slane %v310, 2
        %v364 = vrot.slane %v311, 2
        %v365 = vrot.slane %v312, 2
        %v366 = vrot.slane %v313, 2
        %v371 = vadd.f32 %v335, %v363
        %v372 = vadd.f32 %v336, %v364
        %v373 = vadd.f32 %v337, %v365
        %v374 = vadd.f32 %v338, %v366
        %v379 = vrot.slane %v315, 2
        %v380 = vrot.slane %v316, 2
        %v381 = vrot.slane %v317, 2
        %v382 = vrot.slane %v318, 2
        %v387 = vadd.f32 %v355, %v379
        %v388 = vadd.f32 %v356, %v380
        %v389 = vadd.f32 %v357, %v381
        %v390 = vadd.f32 %v358, %v382
        %v395 = vrot.slane %v371, 6
        %v396 = vrot.slane %v372, 6
        %v397 = vrot.slane %v373, 6
        %v398 = vrot.slane %v374, 6
        %v407 = vrot.slane %v387, 6
        %v408 = vrot.slane %v388, 6
        %v409 = vrot.slane %v389, 6
        %v410 = vrot.slane %v390, 6
        %vm415 = vcmask 1040384
        %v416 = vsel %vm415, %v335, %v355
        %v417 = vsel %vm415, %v336, %v356
        %v418 = vsel %vm415, %v337, %v357
        %v419 = vsel %vm415, %v338, %v358
        %vm420 = vcmask 1041408
        %v421 = vsel %vm420, %v416, %v395
        %v422 = vsel %vm420, %v417, %v396
        %v423 = vsel %vm420, %v418, %v397
        %v424 = vsel %vm420, %v419, %v398
        %vm425 = vcmask 1042432
        %v426 = vsel %vm425, %v421, %v407
        %v427 = vsel %vm425, %v422, %v408
        %v428 = vsel %vm425, %v423, %v409
        %v429 = vsel %vm425, %v424, %v410
        %vm430 = vcmask 1043456
        %v431 = vsel %vm430, %v426, %v245
        %v432 = vsel %vm430, %v427, %v247
        %v433 = vsel %vm430, %v428, %v253
        %v434 = vsel %vm430, %v429, %v255
        %435 = vst [vmem:[%s197] sm:$0xff] %v431
        %436 = vst [vmem:[%s197 + $0x8] sm:$0xff] %v432
        %437 = vst [vmem:[%s197 + $0x10] sm:$0xff] %v249
        %438 = vst [vmem:[%s197 + $0x18] sm:$0xff] %v251
        %439 = vst [vmem:[%s197 + $0x20] sm:$0xff] %v433
        %440 = vst [vmem:[%s197 + $0x28] sm:$0xff] %v434
        %441 = vst [vmem:[%s197 + $0x30] sm:$0xff] %v257
        %442 = vst [vmem:[%s197 + $0x38] sm:$0xff] %v259
        %s443 = sand.u32 %s91, 1
        %s444 = sand.u32 %s91, 1
        %s445 = smul.addr %s444, 64
        %s446 = scalar_lea.vmem [#allocation5], %s445
        // Predicated region
        $region52: #{yolo_format_outputs.1} parent=46 // pred_check
          %p447 = pneg %p101
        $region53: #{yolo_format_outputs.1} parent=46 // pred_check_branch
          %449 = sbr.rel (%p447) target = $region55
        $region54: #{yolo_format_outputs.1} parent=46 // pred_region
          %s450 = smul.u32 2, %s24
          %s451 = smul.addr %s25, 4
          %s452 = smul.addr %s450, 12
          %s453 = sadd.s32 %s451, %s452
          %s454 = smul.addr %s453, 8
          %s455 = scalar_lea.vmem %s3, %s454
          // Predicated region
          $region56: #{yolo_format_outputs.1} parent=54 // pred_check
            _
          $region57: #{yolo_format_outputs.1} parent=54 // pred_check_branch
            %457 = sbr.rel (0) target = $region59
          $region58: #{yolo_format_outputs.1} parent=54 // pred_region
            // Predicated region
            $region60: #{yolo_format_outputs.1} parent=58 // pred_check
              _
            $region61: #{yolo_format_outputs.1} parent=58 // pred_check_branch
              %459 = sbr.rel (0) target = $region63
            $region62: #{yolo_format_outputs.1} parent=58 // pred_region
              loop: start=0, step=1, limit=1
              $region64: #{yolo_format_outputs.1} parent=62 // loop_pre_header
                _
              $region65: #{yolo_format_outputs.1} parent=62 // loop_header
                %s461 = sphi 0, %s465
                %p462 = scmp.ge.s32.totalorder %s461, 1
                %s466 = sphi %s446, %s446
                %s467 = sphi %s455, %s455
              $region66: #{yolo_format_outputs.1} parent=62 // loop_header_branch
                %464 = sbr.rel (%p462) target = $region70
              $region67: #{yolo_format_outputs.1} parent=62 // loop_body
                %v468 = vld [vmem:[%s466] sm:$0xff]
                %469 = vst [vmem:[%s467] sm:$0xff] %v468
                %v470 = vld [vmem:[%s466 + $0x8] sm:$0xff]
                %471 = vst [vmem:[%s467 + $0x8] sm:$0xff] %v470
                %v472 = vld [vmem:[%s466 + $0x10] sm:$0xff]
                %473 = vst [vmem:[%s467 + $0x10] sm:$0xff] %v472
                %v474 = vld [vmem:[%s466 + $0x18] sm:$0xff]
                %475 = vst [vmem:[%s467 + $0x18] sm:$0xff] %v474
                %v476 = vld [vmem:[%s466 + $0x20] sm:$0xff]
                %477 = vst [vmem:[%s467 + $0x60] sm:$0xff] %v476
                %v478 = vld [vmem:[%s466 + $0x28] sm:$0xff]
                %479 = vst [vmem:[%s467 + $0x68] sm:$0xff] %v478
                %v480 = vld [vmem:[%s466 + $0x30] sm:$0xff]
                %481 = vst [vmem:[%s467 + $0x70] sm:$0xff] %v480
                %v482 = vld [vmem:[%s466 + $0x38] sm:$0xff]
                %483 = vst [vmem:[%s467 + $0x78] sm:$0xff] %v482
              $region68: #{yolo_format_outputs.1} parent=62 // loop_footer
                %s465 = sadd.s32 1, %s461
              $region69: #{yolo_format_outputs.1} parent=62 // loop_footer_branch
                %460 = sbr.rel target = $region65
              $region70: #{yolo_format_outputs.1} parent=62 // loop_exit
                _
            $region63: #{yolo_format_outputs.1} parent=58 // pred_fallthru
              _
            // Predicated region
            $region71: #{yolo_format_outputs.1} parent=58 // pred_check
              _
            $region72: #{yolo_format_outputs.1} parent=58 // pred_check_branch
              %485 = sbr.rel target = $region74
            $region73: #{yolo_format_outputs.1} parent=58 // pred_region
              _
            $region74: #{yolo_format_outputs.1} parent=58 // pred_fallthru
              _
          $region59: #{yolo_format_outputs.1} parent=54 // pred_fallthru
            _
          %486 = vnop
        $region55: #{yolo_format_outputs.1} parent=46 // pred_fallthru
          _
      $region47: #{yolo_format_outputs.1} parent=5 // pred_fallthru
        _
      %p487 = scmp.le.s32.totalorder 2, %s15
      // Predicated region
      $region75: #{yolo_format_outputs.1} parent=5 // pred_check
        %p488 = pneg %p487
      $region76: #{yolo_format_outputs.1} parent=5 // pred_check_branch
        %490 = sbr.rel (%p488) target = $region78
      $region77: #{yolo_format_outputs.1} parent=5 // pred_region
        %s491 = ssub.s32 %s15, 2
        // Predicated region
        $region79: #{yolo_format_outputs.1} parent=77 // pred_check
          %p492 = pneg %p107
        $region80: #{yolo_format_outputs.1} parent=77 // pred_check_branch
          %494 = sbr.rel (%p492) target = $region82
        $region81: #{yolo_format_outputs.1} parent=77 // pred_region
          %s495 = sand.u32 %s92, 1
          %s496 = sand.u32 %s92, 1
          %s497 = smul.addr %s496, 64
          %s498 = scalar_lea.vmem [#allocation5], %s497
        $region82: #{yolo_format_outputs.1} parent=77 // pred_fallthru
          _
      $region78: #{yolo_format_outputs.1} parent=5 // pred_fallthru
        _
    $region6: #{yolo_format_outputs.1} parent=1 // loop_footer
      %s19 = sadd.s32 1, %s15
    $region7: #{yolo_format_outputs.1} parent=1 // loop_footer_branch
      %14 = sbr.rel target = $region3
    $region8: #{yolo_format_outputs.1} parent=1 // loop_exit
      _

</llo_original>
